<compile_context>
chip_gen: v5e
topology: v5e:2x2
jax: 0.10.0
libtpu: 0.0.40
codegen_flags: <defaults>
</compile_context>

<pallas_src>
import functools
import math

import numpy as np
import jax
import jax.numpy as jnp
from jax.experimental import pallas as pl
from jax.experimental.pallas import tpu as pltpu


def _round_up(x, m):
    return ((x + m - 1) // m) * m


def _largest_tile(padded_dim, cap):
    """Largest divisor of `padded_dim` that is a multiple of 128 and <= cap."""
    q = padded_dim // 128
    dmax = max(1, min(q, cap // 128))
    for d in range(dmax, 0, -1):
        if q % d == 0:
            return 128 * d
    return 128


_ACTIVATIONS = {
    # activation_type -> (negative_slope, base activate_scale)
    'linear': (1.0, 1.0),
    'relu':   (0.0, math.sqrt(2.0)),
    'lrelu':  (0.2, math.sqrt(2.0)),
}


# ----------------------------------------------------------------------------
# Pallas kernel: tiled  act((X @ W) + b) * act_scale, accumulated into o_ref
# ----------------------------------------------------------------------------
def _dense_block_kernel(*refs, neg_slope, act_scale, has_bias):
    if has_bias:
        x_ref, w_ref, b_ref, o_ref = refs
    else:
        x_ref, w_ref, o_ref = refs
        b_ref = None

    k = pl.program_id(2)

    @pl.when(k == 0)
    def _init():
        o_ref[...] = jnp.zeros_like(o_ref)

    # bf16 x bf16 -> f32 accumulation on the MXU, directly into the
    # VMEM-resident f32 output tile (output BlockSpec ignores k).
    o_ref[...] += jnp.dot(x_ref[...], w_ref[...],
                          preferred_element_type=jnp.float32)

    # Specialized epilogue: only emit work that is actually needed.
    if has_bias or neg_slope != 1.0 or act_scale != 1.0:
        @pl.when(k == pl.num_programs(2) - 1)
        def _finalize():
            y = o_ref[...]
            if has_bias:
                y = y + b_ref[...]                       # (tm, tn) + (1, tn)
            if neg_slope != 1.0:
                y = jnp.where(y >= 0.0, y, y * neg_slope)
            if act_scale != 1.0:
                y = y * act_scale
            o_ref[...] = y


def _fused_dense(xp, wp, bp, *, tm, tn, tk, neg_slope, act_scale, vmem_limit):
    """xp: (Mp, Kp) bf16, wp: (Kp, Np) bf16, bp: (1, Np) f32 or None."""
    Mp, Kp = xp.shape
    _, Np = wp.shape
    grid = (Mp // tm, Np // tn, Kp // tk)
    has_bias = bp is not None

    in_specs = [
        pl.BlockSpec((tm, tk), lambda i, j, k: (i, k)),
        pl.BlockSpec((tk, tn), lambda i, j, k: (k, j)),
    ]
    args = [xp, wp]
    if has_bias:
        in_specs.append(pl.BlockSpec((1, tn), lambda i, j, k: (0, j)))
        args.append(bp)

    return pl.pallas_call(
        functools.partial(_dense_block_kernel,
                          neg_slope=float(neg_slope),
                          act_scale=float(act_scale),
                          has_bias=has_bias),
        out_shape=jax.ShapeDtypeStruct((Mp, Np), jnp.float32),
        grid_spec=pltpu.PrefetchScalarGridSpec(
            num_scalar_prefetch=0,
            grid=grid,
            in_specs=in_specs,
            out_specs=pl.BlockSpec((tm, tn), lambda i, j, k: (i, j)),
        ),
        compiler_params=pltpu.CompilerParams(
            dimension_semantics=("parallel", "parallel", "arbitrary"),
            vmem_limit_bytes=vmem_limit),
    )(*args)


def _dense_forward(x, wp, bp, *, in_features, out_features, tk, tn,
                   neg_slope, act_scale):
    if x.ndim != 2:
        x = x.reshape(x.shape[0], -1)        # matches torch x.view(batch, -1)
    M, K = x.shape
    assert K == in_features, (K, in_features)
    Kp, Np = wp.shape

    # M tile: multiple of 16 (bf16 sublane packing), shrunk so the last tile
    # is never mostly padding (avoids garbage DMA/writeback + slice copies).
    tm = min(_round_up(M, 16), 256)
    while tm > 16 and (_round_up(M, tm) - M) >= tm // 2:
        tm //= 2
    Mp = _round_up(M, tm)

    # Pad/cast x directly in bf16 (no f32 intermediate round trip).
    xp = x.astype(jnp.bfloat16)
    if (Mp, Kp) != (M, K):
        xp = jnp.pad(xp, ((0, Mp - M), (0, Kp - K)))

    # Explicit scoped-VMEM budget: double-buffered bf16 inputs + f32 output
    # tile (+ bias), with headroom; portable across v5e/v6e/v7x defaults.
    vmem_need = (2 * (tm * tk + tk * tn) * 2      # bf16 x / W tiles, 2 buffers
                 + 2 * tm * tn * 4)               # f32 output tile, 2 buffers
    if bp is not None:
        vmem_need += 2 * Np * 4
    vmem_limit = min(max(2 * vmem_need, 32 << 20), 48 << 20)

    out = _fused_dense(xp, wp, bp, tm=tm, tn=tn, tk=tk,
                       neg_slope=neg_slope, act_scale=act_scale,
                       vmem_limit=vmem_limit)
    return out[:M, :out_features]


# ----------------------------------------------------------------------------
# DenseBlock: holds pre-scaled / pre-padded bf16 weights, calls the kernel
# ----------------------------------------------------------------------------
class DenseBlock:
    """JAX/Pallas port of the StyleGAN2 discriminator DenseBlock forward."""

    def __init__(self, weight, bias=None, *, weight_gain=1.0,
                 lr_multiplier=1.0, add_bias=True, activation_type='lrelu'):
        if activation_type not in _ACTIVATIONS:
            raise NotImplementedError(
                f'Not implemented activation function: {activation_type}!')
        out_channels, in_channels = weight.shape       # torch nn.Linear layout
        neg_slope, base_scale = _ACTIVATIONS[activation_type]

        # Padding granularity is decoupled from tile size: pad to 128 only,
        # then pick tiles as divisors of the padded dims (no inflated weight
        # bytes streamed from HBM).
        Kp = _round_up(in_channels, 128)
        Np = _round_up(out_channels, 128)

        # Big tiles: this layer is weight-streaming / grid-overhead bound, so
        # fewer, fatter grid steps win.  tk up to 2048 (full-K stripe for
        # typical StyleGAN2 layers), tn up to 512.
        tk = _largest_tile(Kp, 2048)
        tn = _largest_tile(Np, 512)
        # Keep >= 2 N-tiles on wide layers so both v7x TensorCores get work
        # (M grid extent is 1 at small batch, so j is the only parallel axis).
        if Np // tn == 1 and Np >= 256:
            tn = _largest_tile(Np, tn // 2)

        # Fold weight_scale in, transpose to (K, N), pad, cast to bf16 ONCE.
        weight_scale = weight_gain / math.sqrt(in_channels)
        wmat = jnp.asarray(weight, jnp.float32).T * weight_scale
        self.wp = jnp.pad(wmat, ((0, Kp - in_channels),
                                 (0, Np - out_channels))).astype(jnp.bfloat16)

        if add_bias:
            b = (jnp.asarray(bias, jnp.float32) if bias is not None
                 else jnp.zeros((out_channels,), jnp.float32))
            self.bp = jnp.pad(b, (0, Np - out_channels)).reshape(1, Np)
        else:
            self.bp = None                    # no bias buffer streamed at all

        self.out_channels = out_channels
        self._forward = jax.jit(functools.partial(
            _dense_forward,
            in_features=in_channels,
            out_features=out_channels,
            tk=tk, tn=tn,
            neg_slope=neg_slope,
            act_scale=base_scale * lr_multiplier))

    def __call__(self, x):
        return self._forward(x, self.wp, self.bp)


# ----------------------------------------------------------------------------
# Pure-JAX reference (mirrors the PyTorch module exactly, in f32)
# ----------------------------------------------------------------------------
def dense_block_ref(x, weight, bias, *, weight_gain=1.0, lr_multiplier=1.0,
                    add_bias=True, activation_type='lrelu'):
    if x.ndim != 2:
        x = x.reshape(x.shape[0], -1)
    ws = weight_gain / math.sqrt(weight.shape[1])
    y = (x @ weight.T) * ws
    if add_bias and bias is not None:
        y = y + bias.reshape(1, -1)
    neg_slope, base_scale = _ACTIVATIONS[activation_type]
    y = jnp.where(y >= 0.0, y, y * neg_slope)
    return y * base_scale * lr_multiplier


# ----------------------------------------------------------------------------
if __name__ == "__main__":
    key = jax.random.PRNGKey(0)
    kx, kw, kb = jax.random.split(key, 3)

    # Shapes like Dense0 of the discriminator: flatten an NCHW feature map.
    batch, channels, spatial = 2, 4, 16
    in_channels = channels * spatial * spatial        # 1024
    out_channels = 256

    x = jax.random.normal(kx, (batch, channels, spatial, spatial), jnp.float32)
    weight = 0.05 * jax.random.normal(kw, (out_channels, in_channels), jnp.float32)
    bias = 0.1 * jax.random.normal(kb, (out_channels,), jnp.float32)

    block = DenseBlock(weight, bias, weight_gain=1.0, lr_multiplier=1.0,
                       add_bias=True, activation_type='lrelu')
    out = jax.block_until_ready(block(x))
    ref = dense_block_ref(x, weight, bias, activation_type='lrelu')

    assert out.shape == (batch, out_channels), out.shape
    assert bool(jnp.all(jnp.isfinite(out)))
    np.testing.assert_allclose(np.asarray(out), np.asarray(ref),
                               rtol=5e-2, atol=5e-3)

    # Also exercise the already-2D input path, relu, and add_bias=False
    # (non-multiple-of-128 K/N -> padded; no bias buffer in the kernel).
    x2 = jax.random.normal(jax.random.PRNGKey(1), (4, 96), jnp.float32)
    w2 = 0.05 * jax.random.normal(jax.random.PRNGKey(2), (64, 96), jnp.float32)
    block2 = DenseBlock(w2, None, add_bias=False, activation_type='relu')
    out2 = jax.block_until_ready(block2(x2))
    ref2 = dense_block_ref(x2, w2, None, add_bias=False, activation_type='relu')
    np.testing.assert_allclose(np.asarray(out2), np.asarray(ref2),
                               rtol=5e-2, atol=5e-3)

    # And a 'linear' activation path (epilogue reduces to the bias add).
    block3 = DenseBlock(weight, bias, lr_multiplier=0.5, activation_type='linear')
    out3 = jax.block_until_ready(block3(x))
    ref3 = dense_block_ref(x, weight, bias, lr_multiplier=0.5,
                           activation_type='linear')
    np.testing.assert_allclose(np.asarray(out3), np.asarray(ref3),
                               rtol=5e-2, atol=5e-3)

    print("KERNEL_OK")
</pallas_src>

<mosaic_0001>
module attributes {stable_mosaic.version = 11 : i64} {
  func.func @_dense_block_kernel(%arg0: i32, %arg1: i32, %arg2: i32, %arg3: memref<16x1024xbf16, #tpu.memory_space<vmem>>, %arg4: memref<1024x128xbf16, #tpu.memory_space<vmem>>, %arg5: memref<1x128xf32, #tpu.memory_space<vmem>>, %arg6: memref<16x128xf32, #tpu.memory_space<vmem>>) attributes {dimension_semantics = [#tpu.dimension_semantics<parallel>, #tpu.dimension_semantics<parallel>, #tpu.dimension_semantics<arbitrary>], iteration_bounds = array<i64: 1, 2, 1>, scalar_prefetch = 0 : i64, scratch_operands = 0 : i64, tpu.core_type = #tpu.core_type<tc>, window_params = [{transform_indices = @transform_0, window_bounds = array<i64: 16, 1024>}, {transform_indices = @transform_1, window_bounds = array<i64: 1024, 128>}, {transform_indices = @transform_2, window_bounds = array<i64: 1, 128>}, {transform_indices = @transform_3, window_bounds = array<i64: 16, 128>}]} {
    %c0_i32 = arith.constant 0 : i32
    %0 = arith.cmpi eq, %arg2, %c0_i32 : i32
    %1 = arith.extui %0 : i1 to i32
    %c0_i32_0 = arith.constant 0 : i32
    %2 = arith.cmpi ne, %1, %c0_i32_0 : i32
    scf.if %2 {
      %cst_10 = arith.constant 0.000000e+00 : f32
      %12 = vector.broadcast %cst_10 : f32 to vector<16x128xf32>
      %c0_11 = arith.constant 0 : index
      %c0_12 = arith.constant 0 : index
      %13 = vector.load %arg6[%c0_11, %c0_12] : memref<16x128xf32, #tpu.memory_space<vmem>>, vector<16x128xf32>
      tpu.vector_store %arg6[%c0_11, %c0_12], %12 {strides = array<i32>} : memref<16x128xf32, #tpu.memory_space<vmem>>, vector<16x128xf32>,
    } else {
    }
    %c0 = arith.constant 0 : index
    %c0_1 = arith.constant 0 : index
    %3 = vector.load %arg6[%c0, %c0_1] : memref<16x128xf32, #tpu.memory_space<vmem>>, vector<16x128xf32>
    %c0_2 = arith.constant 0 : index
    %c0_3 = arith.constant 0 : index
    %4 = vector.load %arg3[%c0_2, %c0_3] : memref<16x1024xbf16, #tpu.memory_space<vmem>>, vector<16x1024xbf16>
    %c0_4 = arith.constant 0 : index
    %c0_5 = arith.constant 0 : index
    %5 = vector.load %arg4[%c0_4, %c0_5] : memref<1024x128xbf16, #tpu.memory_space<vmem>>, vector<1024x128xbf16>
    %cst = arith.constant dense<0.000000e+00> : vector<16x128xf32>
    %6 = tpu.matmul %4, %5, %cst {dimension_numbers = #tpu.dot_dimension_numbers<[1], [0], [0], [1], [0, 0, 1, 1], [], []>} : vector<16x1024xbf16>, vector<1024x128xbf16>, vector<16x128xf32> -> vector<16x128xf32>
    %7 = arith.addf %3, %6 : vector<16x128xf32>
    %c0_6 = arith.constant 0 : index
    %c0_7 = arith.constant 0 : index
    %8 = vector.load %arg6[%c0_6, %c0_7] : memref<16x128xf32, #tpu.memory_space<vmem>>, vector<16x128xf32>
    tpu.vector_store %arg6[%c0_6, %c0_7], %7 {strides = array<i32>} : memref<16x128xf32, #tpu.memory_space<vmem>>, vector<16x128xf32>,
    %c0_i32_8 = arith.constant 0 : i32
    %9 = arith.cmpi eq, %arg2, %c0_i32_8 : i32
    %10 = arith.extui %9 : i1 to i32
    %c0_i32_9 = arith.constant 0 : i32
    %11 = arith.cmpi ne, %10, %c0_i32_9 : i32
    scf.if %11 {
      %c0_10 = arith.constant 0 : index
      %c0_11 = arith.constant 0 : index
      %12 = vector.load %arg6[%c0_10, %c0_11] : memref<16x128xf32, #tpu.memory_space<vmem>>, vector<16x128xf32>
      %c0_12 = arith.constant 0 : index
      %c0_13 = arith.constant 0 : index
      %13 = vector.load %arg5[%c0_12, %c0_13] : memref<1x128xf32, #tpu.memory_space<vmem>>, vector<1x128xf32>
      %14 = vector.broadcast %13 : vector<1x128xf32> to vector<16x128xf32>
      %15 = arith.addf %12, %14 : vector<16x128xf32>
      %cst_14 = arith.constant 0.000000e+00 : f32
      %16 = vector.broadcast %cst_14 : f32 to vector<16x128xf32>
      %17 = arith.cmpf oge, %15, %16 : vector<16x128xf32>
      %cst_15 = arith.constant 2.000000e-01 : f32
      %18 = vector.broadcast %cst_15 : f32 to vector<16x128xf32>
      %19 = arith.mulf %15, %18 : vector<16x128xf32>
      %20 = arith.select %17, %15, %19 : vector<16x128xi1>, vector<16x128xf32>
      %cst_16 = arith.constant 1.41421354 : f32
      %21 = vector.broadcast %cst_16 : f32 to vector<16x128xf32>
      %22 = arith.mulf %20, %21 : vector<16x128xf32>
      %c0_17 = arith.constant 0 : index
      %c0_18 = arith.constant 0 : index
      %23 = vector.load %arg6[%c0_17, %c0_18] : memref<16x128xf32, #tpu.memory_space<vmem>>, vector<16x128xf32>
      tpu.vector_store %arg6[%c0_17, %c0_18], %22 {strides = array<i32>} : memref<16x128xf32, #tpu.memory_space<vmem>>, vector<16x128xf32>,
    } else {
    }
    return
  }
  func.func @transform_0(%arg0: i32, %arg1: i32, %arg2: i32) -> (i32, i32) {
    %c0_i32 = arith.constant 0 : i32
    return %arg0, %arg2 : i32, i32
  }
  func.func @transform_1(%arg0: i32, %arg1: i32, %arg2: i32) -> (i32, i32) {
    %c0_i32 = arith.constant 0 : i32
    return %arg2, %arg1 : i32, i32
  }
  func.func @transform_2(%arg0: i32, %arg1: i32, %arg2: i32) -> (i32, i32) {
    %c0_i32 = arith.constant 0 : i32
    %c0_i32_0 = arith.constant 0 : i32
    return %c0_i32, %arg1 : i32, i32
  }
  func.func @transform_3(%arg0: i32, %arg1: i32, %arg2: i32) -> (i32, i32) {
    %c0_i32 = arith.constant 0 : i32
    return %arg0, %arg1 : i32, i32
  }
}

</mosaic_0001>

<llo_original>
// kernel: _dense_forward.1
$region0: #{_dense_forward.1}
  #allocation0 [shape = 'u32[]', space=smem, size = 0x4, offset = 0x4, fixed_abs, tag = 'smem constant byte address 0x4 - core index']
  #allocation1 [shape = 'u32[72,128]{1,0:T(1,128)}', space=vmem, size = 0x9000, scoped, tag = 'internal scratch']
  %s0 = inlined_call_operand.vmem [shape: bf16[16,1024], index: 0, kind: input, shape index: {}]
  %s1 = inlined_call_operand.hbm [shape: bf16[1024,256], index: 1, kind: input, shape index: {}]
  %s2 = inlined_call_operand.vmem [shape: f32[1,256], index: 2, kind: input, shape index: {}]
  %s3 = inlined_call_operand.vmem [shape: f32[16,256], index: 3, kind: output, shape index: {}]
  %s4 = sld [smem:[#allocation0]]
  $region91: #{_dense_forward.1} parent=0
    _
  %s6 = ssub.s32 1, %s4
  %s7 = scalar_select 0, %s6, %s4
  $region1: #{_dense_forward.1} parent=0
    #allocation2 [shape = 'u8[524288]{0}', space=vmem, size = 0x80000, scoped, tag = 'input window, operand 1']
    #allocation3 [shape = 's32[2]{0}', space=sflag, size = 0x8, scoped, tag = 'scoped memory for _dense_forward.1']
    #allocation4 [shape = 'u8[16384]{0}', space=vmem, size = 0x4000, scoped, tag = 'output window, operand 0']
    %8 = vsyncpa [#allocation3], 0
    %s9 = scalar_lea.sflag [#allocation3], 1
    %10 = vsyncpa %s9, 0
    loop: start=0, step=1, limit=4
    $region2: #{_dense_forward.1} parent=1 // loop_pre_header
      _
    $region3: #{_dense_forward.1} parent=1 // loop_header
      %s12 = sphi 0, %s16
      %p13 = scmp.ge.s32.totalorder %s12, 4
      %s19 = sphi 0, %s38
      %s20 = sphi 0, %s34
      %s21 = sphi 0, %s30
      %s22 = sphi 0, %s19
      %s23 = sphi 0, %s20
      %s24 = sphi 0, %s21
      %s25 = sphi 0, %s22
      %s26 = sphi 0, %s23
      %s27 = sphi 0, %s24
      %s43 = sphi 0, %s45
      %s46 = sphi 0, %s43
      %s47 = sphi 0, %s46
      %s63 = sphi 0, %s47
      %s71 = sphi 0, %s73
      %s74 = sphi 0, %s71
      %s75 = sphi 0, %s74
      %s91 = sphi 0, %s75
      %s97 = sphi 0, %s99
      %s100 = sphi 0, %s97
      %s101 = sphi 0, %s100
      %s117 = sphi 0, %s101
      %s125 = sphi 0, %s127
      %s128 = sphi 0, %s125
      %s129 = sphi 0, %s128
      %s145 = sphi 0, %s129
    $region4: #{_dense_forward.1} parent=1 // loop_header_branch
      %15 = sbr.rel (%p13) target = $region8
    $region5: #{_dense_forward.1} parent=1 // loop_body
      %s17 = ssub.s32 %s12, 1
      %s18 = ssub.s32 %s12, 2
      %s28 = sadd.s32 1, %s21
      %p29 = scmp.ge.s32.totalorder %s28, 1
      %s30 = scalar_select %p29, 0, %s28
      %s31 = sadd.s32 1, %s20
      %s32 = scalar_select %p29, %s31, %s20
      %p33 = scmp.ge.s32.totalorder %s32, 2
      %s34 = scalar_select %p33, 0, %s32
      %s35 = sadd.s32 1, %s19
      %s36 = scalar_select %p33, %s35, %s19
      %p37 = scmp.ge.s32.totalorder %s36, 1
      %s38 = scalar_select %p37, 0, %s36
      %s39 = ssub.s32 %s19, %s38
      %s40 = ssub.s32 %s21, %s30
      %s41 = sor.u32 %s39, %s40
      %p42 = scmp.eq.s32.totalorder %s41, 0
      %s44 = sadd.s32 %s43, 1
      %s45 = scalar_select %p42, %s43, %s44
      %p48 = pneg %p42
      %p49 = scmp.eq.s32.totalorder %s12, 1
      %p50 = por %p48, %p49
      %p51 = scmp.ne.s32.totalorder %s43, %s46
      %p52 = scmp.eq.s32.totalorder %s12, 0
      %p53 = por %p51, %p52
      %p54 = scmp.ne.s32.totalorder %s43, %s46
      %p55 = scmp.eq.s32.totalorder %s17, 1
      %p56 = por %p54, %p55
      %p57 = scmp.ne.s32.totalorder %s46, %s47
      %p58 = scmp.eq.s32.totalorder %s17, 0
      %p59 = por %p57, %p58
      %p60 = scmp.ne.s32.totalorder %s46, %s47
      %p61 = scmp.eq.s32.totalorder %s18, 1
      %p62 = por %p60, %p61
      %p64 = scmp.ne.s32.totalorder %s47, %s63
      %p65 = scmp.eq.s32.totalorder %s18, 0
      %p66 = por %p64, %p65
      %s67 = ssub.s32 %s21, %s30
      %s68 = ssub.s32 %s20, %s34
      %s69 = sor.u32 %s67, %s68
      %p70 = scmp.eq.s32.totalorder %s69, 0
      %s72 = sadd.s32 %s71, 1
      %s73 = scalar_select %p70, %s71, %s72
      %p76 = pneg %p70
      %p77 = scmp.eq.s32.totalorder %s12, 1
      %p78 = por %p76, %p77
      %p79 = scmp.ne.s32.totalorder %s71, %s74
      %p80 = scmp.eq.s32.totalorder %s12, 0
      %p81 = por %p79, %p80
      %p82 = scmp.ne.s32.totalorder %s71, %s74
      %p83 = scmp.eq.s32.totalorder %s17, 1
      %p84 = por %p82, %p83
      %p85 = scmp.ne.s32.totalorder %s74, %s75
      %p86 = scmp.eq.s32.totalorder %s17, 0
      %p87 = por %p85, %p86
      %p88 = scmp.ne.s32.totalorder %s74, %s75
      %p89 = scmp.eq.s32.totalorder %s18, 1
      %p90 = por %p88, %p89
      %p92 = scmp.ne.s32.totalorder %s75, %s91
      %p93 = scmp.eq.s32.totalorder %s18, 0
      %p94 = por %p92, %p93
      %s95 = ssub.s32 %s20, %s34
      %p96 = scmp.eq.s32.totalorder %s95, 0
      %s98 = sadd.s32 %s97, 1
      %s99 = scalar_select %p96, %s97, %s98
      %p102 = pneg %p96
      %p103 = scmp.eq.s32.totalorder %s12, 1
      %p104 = por %p102, %p103
      %p105 = scmp.ne.s32.totalorder %s97, %s100
      %p106 = scmp.eq.s32.totalorder %s12, 0
      %p107 = por %p105, %p106
      %p108 = scmp.ne.s32.totalorder %s97, %s100
      %p109 = scmp.eq.s32.totalorder %s17, 1
      %p110 = por %p108, %p109
      %p111 = scmp.ne.s32.totalorder %s100, %s101
      %p112 = scmp.eq.s32.totalorder %s17, 0
      %p113 = por %p111, %p112
      %p114 = scmp.ne.s32.totalorder %s100, %s101
      %p115 = scmp.eq.s32.totalorder %s18, 1
      %p116 = por %p114, %p115
      %p118 = scmp.ne.s32.totalorder %s101, %s117
      %p119 = scmp.eq.s32.totalorder %s18, 0
      %p120 = por %p118, %p119
      %s121 = ssub.s32 %s19, %s38
      %s122 = ssub.s32 %s20, %s34
      %s123 = sor.u32 %s121, %s122
      %p124 = scmp.eq.s32.totalorder %s123, 0
      %s126 = sadd.s32 %s125, 1
      %s127 = scalar_select %p124, %s125, %s126
      %p130 = pneg %p124
      %p131 = scmp.eq.s32.totalorder %s12, 1
      %p132 = por %p130, %p131
      %p133 = scmp.ne.s32.totalorder %s125, %s128
      %p134 = scmp.eq.s32.totalorder %s12, 0
      %p135 = por %p133, %p134
      %p136 = scmp.ne.s32.totalorder %s125, %s128
      %p137 = scmp.eq.s32.totalorder %s17, 1
      %p138 = por %p136, %p137
      %p139 = scmp.ne.s32.totalorder %s128, %s129
      %p140 = scmp.eq.s32.totalorder %s17, 0
      %p141 = por %p139, %p140
      %p142 = scmp.ne.s32.totalorder %s128, %s129
      %p143 = scmp.eq.s32.totalorder %s18, 1
      %p144 = por %p142, %p143
      %p146 = scmp.ne.s32.totalorder %s129, %s145
      %p147 = scmp.eq.s32.totalorder %s18, 0
      %p148 = por %p146, %p147
      %p149 = scmp.le.s32.totalorder 1, %s12
      %p150 = scmp.lt.s32.totalorder %s12, 3
      %p151 = pnand %p149, %p150
      %p152 = pneg %p151
      // Predicated region
      $region9: #{_dense_forward.1} parent=5 // pred_check
        _
      $region10: #{_dense_forward.1} parent=5 // pred_check_branch
        %154 = sbr.rel (%p151) target = $region12
      $region11: #{_dense_forward.1} parent=5 // pred_region
        %s155 = ssub.s32 %s12, 1
        // Predicated region
        $region13: #{_dense_forward.1} parent=11 // pred_check
          %p156 = pneg %p59
        $region14: #{_dense_forward.1} parent=11 // pred_check_branch
          %158 = sbr.rel (%p156) target = $region16
        $region15: #{_dense_forward.1} parent=11 // pred_region
          %s159 = smul.u32 2, %s22
          %s160 = smul.u32 8, %s24
          %p161 = scmp.lt.s32.totalorder %s159, 1
          %s162 = scalar_select %p161, %s159, 1
          %p163 = scmp.lt.s32.totalorder %s160, 7
          %s164 = scalar_select %p163, %s160, 7
          %s165 = smul.addr %s162, 8
          %s166 = sadd.s32 %s164, %s165
          %s167 = smul.addr %s166, 4
          %s168 = scalar_lea.vmem %s0, %s167
          %s169 = smul.u32 2, %s22
          %s170 = smul.u32 8, %s24
        $region16: #{_dense_forward.1} parent=11 // pred_fallthru
          _
      $region12: #{_dense_forward.1} parent=5 // pred_fallthru
        _
      %p171 = scmp.lt.s32.totalorder %s12, 2
      // Predicated region
      $region17: #{_dense_forward.1} parent=5 // pred_check
        %p172 = pneg %p171
      $region18: #{_dense_forward.1} parent=5 // pred_check_branch
        %174 = sbr.rel (%p172) target = $region20
      $region19: #{_dense_forward.1} parent=5 // pred_region
        // Predicated region
        $region21: #{_dense_forward.1} parent=19 // pred_check
          %p175 = pneg %p81
        $region22: #{_dense_forward.1} parent=19 // pred_check_branch
          %177 = sbr.rel (%p175) target = $region24
        $region23: #{_dense_forward.1} parent=19 // pred_region
          %s178 = sand.u32 %s71, 1
          %s179 = scalar_lea.sflag [#allocation3], %s178
          %s180 = sand.u32 %s71, 1
          %s181 = smul.addr %s180, 512
          %s182 = scalar_lea.vmem [#allocation2], %s181
          %s183 = smul.u32 128, %s21
          %185 = vsyncadd %s179, 0
          %s186 = smul.addr %s183, 2
          %s187 = sadd.s32 %s20, %s186
          %s188 = smul.addr %s187, 4
          %s189 = scalar_lea.hbm %s1, %s188
          %s190 = sshll.u32 %s189, 4
          %s191 = int_to_ptr.hbm [resolvable:$true] %s190
          %s192 = sshll.u32 %s182, 4
          %s193 = int_to_ptr.vmem [resolvable:$true] %s192
          %198 = dma.hbm_to_vmem [thread:$0]  %s191, 8192, %s193, %s179, 128, 64, 4
        $region24: #{_dense_forward.1} parent=19 // pred_fallthru
          _
        // Predicated region
        $region25: #{_dense_forward.1} parent=19 // pred_check
          %p199 = pneg %p107
        $region26: #{_dense_forward.1} parent=19 // pred_check_branch
          %201 = sbr.rel (%p199) target = $region28
        $region27: #{_dense_forward.1} parent=19 // pred_region
          %p202 = scmp.lt.s32.totalorder %s20, 1
          %s203 = scalar_select %p202, %s20, 1
          %s204 = scalar_lea.vmem %s2, %s203
        $region28: #{_dense_forward.1} parent=19 // pred_fallthru
          _
      $region20: #{_dense_forward.1} parent=5 // pred_fallthru
        _
      %p205 = scmp.le.s32.totalorder 1, %s12
      %p206 = scmp.lt.s32.totalorder %s12, 3
      %p207 = pnand %p205, %p206
      %p208 = pneg %p207
      // Predicated region
      $region29: #{_dense_forward.1} parent=5 // pred_check
        _
      $region30: #{_dense_forward.1} parent=5 // pred_check_branch
        %210 = sbr.rel (%p207) target = $region32
      $region31: #{_dense_forward.1} parent=5 // pred_region
        %s211 = ssub.s32 %s12, 1
        %s212 = sand.u32 %s74, 1
        %s213 = scalar_lea.sflag [#allocation3], %s212
        %s214 = sand.u32 %s74, 1
        %s215 = smul.addr %s214, 512
        %s216 = scalar_lea.vmem [#allocation2], %s215
        // Predicated region
        $region33: #{_dense_forward.1} parent=31 // pred_check
          %p217 = pneg %p87
        $region34: #{_dense_forward.1} parent=31 // pred_check_branch
          %219 = sbr.rel (%p217) target = $region36
        $region35: #{_dense_forward.1} parent=31 // pred_region
          %221 = dma.done %s213, 8192
        $region36: #{_dense_forward.1} parent=31 // pred_fallthru
          _
        %s222 = smul.u32 2, %s22
        %s223 = smul.u32 8, %s24
        %p224 = scmp.lt.s32.totalorder %s222, 1
        %s225 = scalar_select %p224, %s222, 1
        %p226 = scmp.lt.s32.totalorder %s223, 7
        %s227 = scalar_select %p226, %s223, 7
        %s228 = smul.addr %s225, 8
        %s229 = sadd.s32 %s227, %s228
        %s230 = smul.addr %s229, 4
        %s231 = scalar_lea.vmem %s0, %s230
        %p232 = pneg %p59
        %p233 = pneg %p56
        %s234 = sand.u32 %s74, 1
        %s235 = scalar_lea.sflag [#allocation3], %s234
        %s236 = sand.u32 %s74, 1
        %s237 = smul.addr %s236, 512
        %s238 = scalar_lea.vmem [#allocation2], %s237
        %p239 = pneg %p87
        %p240 = pneg %p84
        %p241 = scmp.lt.s32.totalorder %s23, 1
        %s242 = scalar_select %p241, %s23, 1
        %s243 = scalar_lea.vmem %s2, %s242
        %p244 = pneg %p113
        %p245 = pneg %p110
        %p246 = pneg %p141
        %p247 = pneg %p138
        %s248 = sand.u32 %s128, 1
        %s249 = sand.u32 %s128, 1
        %s250 = smul.addr %s249, 16
        %s251 = scalar_lea.vmem [#allocation4], %s250
        %s252 = smul.u32 2, %s22
        %s253 = smul.u32 8, %s24
        %p254 = scmp.lt.s32.totalorder %s252, 1
        %s255 = scalar_select %p254, %s252, 1
        %p256 = scmp.lt.s32.totalorder %s253, 7
        %s257 = scalar_select %p256, %s253, 7
        %s258 = smul.addr %s255, 8
        %s259 = sadd.s32 %s257, %s258
        %s260 = smul.addr %s259, 4
        %s261 = scalar_lea.vmem %s0, %s260
        %s262 = smul.u32 2, %s22
        %s263 = smul.u32 8, %s24
        %s264 = smul.u32 128, %s24
        %p265 = scmp.lt.s32.totalorder %s23, 1
        %s266 = scalar_select %p265, %s23, 1
        %s267 = scalar_lea.vmem %s2, %s266
        %s268 = smul.u32 2, %s22
        %p269 = scmp.eq.s32.totalorder %s24, 0
        // Predicated region
        $region37: #{_dense_forward.1} parent=31 // pred_check
          %p270 = pneg %p269
        $region38: #{_dense_forward.1} parent=31 // pred_check_branch
          %272 = sbr.rel (%p270) target = $region40
        $region39: #{_dense_forward.1} parent=31 // pred_region
          %273 = vst [vmem:[%s251] sm:$0xff] 0.0
          %274 = vst [vmem:[%s251 + $0x8] sm:$0xff] 0.0
        $region40: #{_dense_forward.1} parent=31 // pred_fallthru
          _
        %v275 = vld [vmem:[%s251] sm:$0xff]
        %v276 = vld [vmem:[%s251 + $0x8] sm:$0xff]
        %v277 = vld [vmem:[%s261] sm:$0xff]
        %v278 = vld [vmem:[%s261 + $0x8] sm:$0xff]
        %v279 = vld [vmem:[%s261 + $0x10] sm:$0xff]
        %v280 = vld [vmem:[%s261 + $0x18] sm:$0xff]
        %v281 = vld [vmem:[%s261 + $0x20] sm:$0xff]
        %v282 = vld [vmem:[%s261 + $0x28] sm:$0xff]
        %v283 = vld [vmem:[%s261 + $0x30] sm:$0xff]
        %v284 = vld [vmem:[%s261 + $0x38] sm:$0xff]
        %v285 = vld [vmem:[%s216] sm:$0xf]
        %v286 = vld [vmem:[%s216 + $0x4] sm:$0xf]
        %v287 = vld [vmem:[%s216 + $0x8] sm:$0xf]
        %v288 = vld [vmem:[%s216 + $0xc] sm:$0xf]
        %v289 = vld [vmem:[%s216 + $0x10] sm:$0xf]
        %v290 = vld [vmem:[%s216 + $0x14] sm:$0xf]
        %v291 = vld [vmem:[%s216 + $0x18] sm:$0xf]
        %v292 = vld [vmem:[%s216 + $0x1c] sm:$0xf]
        %v293 = vld [vmem:[%s216 + $0x20] sm:$0xf]
        %v294 = vld [vmem:[%s216 + $0x24] sm:$0xf]
        %v295 = vld [vmem:[%s216 + $0x28] sm:$0xf]
        %v296 = vld [vmem:[%s216 + $0x2c] sm:$0xf]
        %v297 = vld [vmem:[%s216 + $0x30] sm:$0xf]
        %v298 = vld [vmem:[%s216 + $0x34] sm:$0xf]
        %v299 = vld [vmem:[%s216 + $0x38] sm:$0xf]
        %v300 = vld [vmem:[%s216 + $0x3c] sm:$0xf]
        %v301 = vld [vmem:[%s216 + $0x40] sm:$0xf]
        %v302 = vld [vmem:[%s216 + $0x44] sm:$0xf]
        %v303 = vld [vmem:[%s216 + $0x48] sm:$0xf]
        %v304 = vld [vmem:[%s216 + $0x4c] sm:$0xf]
        %v305 = vld [vmem:[%s216 + $0x50] sm:$0xf]
        %v306 = vld [vmem:[%s216 + $0x54] sm:$0xf]
        %v307 = vld [vmem:[%s216 + $0x58] sm:$0xf]
        %v308 = vld [vmem:[%s216 + $0x5c] sm:$0xf]
        %v309 = vld [vmem:[%s216 + $0x60] sm:$0xf]
        %v310 = vld [vmem:[%s216 + $0x64] sm:$0xf]
        %v311 = vld [vmem:[%s216 + $0x68] sm:$0xf]
        %v312 = vld [vmem:[%s216 + $0x6c] sm:$0xf]
        %v313 = vld [vmem:[%s216 + $0x70] sm:$0xf]
        %v314 = vld [vmem:[%s216 + $0x74] sm:$0xf]
        %v315 = vld [vmem:[%s216 + $0x78] sm:$0xf]
        %v316 = vld [vmem:[%s216 + $0x7c] sm:$0xf]
        %v317 = vld [vmem:[%s216 + $0x80] sm:$0xf]
        %v318 = vld [vmem:[%s216 + $0x84] sm:$0xf]
        %v319 = vld [vmem:[%s216 + $0x88] sm:$0xf]
        %v320 = vld [vmem:[%s216 + $0x8c] sm:$0xf]
        %v321 = vld [vmem:[%s216 + $0x90] sm:$0xf]
        %v322 = vld [vmem:[%s216 + $0x94] sm:$0xf]
        %v323 = vld [vmem:[%s216 + $0x98] sm:$0xf]
        %v324 = vld [vmem:[%s216 + $0x9c] sm:$0xf]
        %v325 = vld [vmem:[%s216 + $0xa0] sm:$0xf]
        %v326 = vld [vmem:[%s216 + $0xa4] sm:$0xf]
        %v327 = vld [vmem:[%s216 + $0xa8] sm:$0xf]
        %v328 = vld [vmem:[%s216 + $0xac] sm:$0xf]
        %v329 = vld [vmem:[%s216 + $0xb0] sm:$0xf]
        %v330 = vld [vmem:[%s216 + $0xb4] sm:$0xf]
        %v331 = vld [vmem:[%s216 + $0xb8] sm:$0xf]
        %v332 = vld [vmem:[%s216 + $0xbc] sm:$0xf]
        %v333 = vld [vmem:[%s216 + $0xc0] sm:$0xf]
        %v334 = vld [vmem:[%s216 + $0xc4] sm:$0xf]
        %v335 = vld [vmem:[%s216 + $0xc8] sm:$0xf]
        %v336 = vld [vmem:[%s216 + $0xcc] sm:$0xf]
        %v337 = vld [vmem:[%s216 + $0xd0] sm:$0xf]
        %v338 = vld [vmem:[%s216 + $0xd4] sm:$0xf]
        %v339 = vld [vmem:[%s216 + $0xd8] sm:$0xf]
        %v340 = vld [vmem:[%s216 + $0xdc] sm:$0xf]
        %v341 = vld [vmem:[%s216 + $0xe0] sm:$0xf]
        %v342 = vld [vmem:[%s216 + $0xe4] sm:$0xf]
        %v343 = vld [vmem:[%s216 + $0xe8] sm:$0xf]
        %v344 = vld [vmem:[%s216 + $0xec] sm:$0xf]
        %v345 = vld [vmem:[%s216 + $0xf0] sm:$0xf]
        %v346 = vld [vmem:[%s216 + $0xf4] sm:$0xf]
        %v347 = vld [vmem:[%s216 + $0xf8] sm:$0xf]
        %v348 = vld [vmem:[%s216 + $0xfc] sm:$0xf]
        %v349 = vld [vmem:[%s216 + $0x100] sm:$0xf]
        %v350 = vld [vmem:[%s216 + $0x104] sm:$0xf]
        %v351 = vld [vmem:[%s216 + $0x108] sm:$0xf]
        %v352 = vld [vmem:[%s216 + $0x10c] sm:$0xf]
        %v353 = vld [vmem:[%s216 + $0x110] sm:$0xf]
        %v354 = vld [vmem:[%s216 + $0x114] sm:$0xf]
        %v355 = vld [vmem:[%s216 + $0x118] sm:$0xf]
        %v356 = vld [vmem:[%s216 + $0x11c] sm:$0xf]
        %v357 = vld [vmem:[%s216 + $0x120] sm:$0xf]
        %v358 = vld [vmem:[%s216 + $0x124] sm:$0xf]
        %v359 = vld [vmem:[%s216 + $0x128] sm:$0xf]
        %v360 = vld [vmem:[%s216 + $0x12c] sm:$0xf]
        %v361 = vld [vmem:[%s216 + $0x130] sm:$0xf]
        %v362 = vld [vmem:[%s216 + $0x134] sm:$0xf]
        %v363 = vld [vmem:[%s216 + $0x138] sm:$0xf]
        %v364 = vld [vmem:[%s216 + $0x13c] sm:$0xf]
        %v365 = vld [vmem:[%s216 + $0x140] sm:$0xf]
        %v366 = vld [vmem:[%s216 + $0x144] sm:$0xf]
        %v367 = vld [vmem:[%s216 + $0x148] sm:$0xf]
        %v368 = vld [vmem:[%s216 + $0x14c] sm:$0xf]
        %v369 = vld [vmem:[%s216 + $0x150] sm:$0xf]
        %v370 = vld [vmem:[%s216 + $0x154] sm:$0xf]
        %v371 = vld [vmem:[%s216 + $0x158] sm:$0xf]
        %v372 = vld [vmem:[%s216 + $0x15c] sm:$0xf]
        %v373 = vld [vmem:[%s216 + $0x160] sm:$0xf]
        %v374 = vld [vmem:[%s216 + $0x164] sm:$0xf]
        %v375 = vld [vmem:[%s216 + $0x168] sm:$0xf]
        %v376 = vld [vmem:[%s216 + $0x16c] sm:$0xf]
        %v377 = vld [vmem:[%s216 + $0x170] sm:$0xf]
        %v378 = vld [vmem:[%s216 + $0x174] sm:$0xf]
        %v379 = vld [vmem:[%s216 + $0x178] sm:$0xf]
        %v380 = vld [vmem:[%s216 + $0x17c] sm:$0xf]
        %v381 = vld [vmem:[%s216 + $0x180] sm:$0xf]
        %v382 = vld [vmem:[%s216 + $0x184] sm:$0xf]
        %v383 = vld [vmem:[%s216 + $0x188] sm:$0xf]
        %v384 = vld [vmem:[%s216 + $0x18c] sm:$0xf]
        %v385 = vld [vmem:[%s216 + $0x190] sm:$0xf]
        %v386 = vld [vmem:[%s216 + $0x194] sm:$0xf]
        %v387 = vld [vmem:[%s216 + $0x198] sm:$0xf]
        %v388 = vld [vmem:[%s216 + $0x19c] sm:$0xf]
        %v389 = vld [vmem:[%s216 + $0x1a0] sm:$0xf]
        %v390 = vld [vmem:[%s216 + $0x1a4] sm:$0xf]
        %v391 = vld [vmem:[%s216 + $0x1a8] sm:$0xf]
        %v392 = vld [vmem:[%s216 + $0x1ac] sm:$0xf]
        %v393 = vld [vmem:[%s216 + $0x1b0] sm:$0xf]
        %v394 = vld [vmem:[%s216 + $0x1b4] sm:$0xf]
        %v395 = vld [vmem:[%s216 + $0x1b8] sm:$0xf]
        %v396 = vld [vmem:[%s216 + $0x1bc] sm:$0xf]
        %v397 = vld [vmem:[%s216 + $0x1c0] sm:$0xf]
        %v398 = vld [vmem:[%s216 + $0x1c4] sm:$0xf]
        %v399 = vld [vmem:[%s216 + $0x1c8] sm:$0xf]
        %v400 = vld [vmem:[%s216 + $0x1cc] sm:$0xf]
        %v401 = vld [vmem:[%s216 + $0x1d0] sm:$0xf]
        %v402 = vld [vmem:[%s216 + $0x1d4] sm:$0xf]
        %v403 = vld [vmem:[%s216 + $0x1d8] sm:$0xf]
        %v404 = vld [vmem:[%s216 + $0x1dc] sm:$0xf]
        %v405 = vld [vmem:[%s216 + $0x1e0] sm:$0xf]
        %v406 = vld [vmem:[%s216 + $0x1e4] sm:$0xf]
        %v407 = vld [vmem:[%s216 + $0x1e8] sm:$0xf]
        %v408 = vld [vmem:[%s216 + $0x1ec] sm:$0xf]
        %v409 = vld [vmem:[%s216 + $0x1f0] sm:$0xf]
        %v410 = vld [vmem:[%s216 + $0x1f4] sm:$0xf]
        %v411 = vld [vmem:[%s216 + $0x1f8] sm:$0xf]
        %v412 = vld [vmem:[%s216 + $0x1fc] sm:$0xf]
        %v421 = vunpack.c.l.b16 %v277
        %v422 = vunpack.c.h.b16 %v277
        %v423 = vunpack.c.l.b16 %v278
        %v424 = vunpack.c.h.b16 %v278
        %v425 = vunpack.c.l.b16 %v279
        %v426 = vunpack.c.h.b16 %v279
        %v427 = vunpack.c.l.b16 %v280
        %v428 = vunpack.c.h.b16 %v280
        %v429 = vunpack.c.l.b16 %v281
        %v430 = vunpack.c.h.b16 %v281
        %v431 = vunpack.c.l.b16 %v282
        %v432 = vunpack.c.h.b16 %v282
        %v433 = vunpack.c.l.b16 %v283
        %v434 = vunpack.c.h.b16 %v283
        %v435 = vunpack.c.l.b16 %v284
        %v436 = vunpack.c.h.b16 %v284
        %v437 = vpack.c.b16 %v429, %v421
        %v438 = vpack.c.b16 %v430, %v422
        %v439 = vpack.c.b16 %v431, %v423
        %v440 = vpack.c.b16 %v432, %v424
        %v441 = vpack.c.b16 %v433, %v425
        %v442 = vpack.c.b16 %v434, %v426
        %v443 = vpack.c.b16 %v435, %v427
        %v444 = vpack.c.b16 %v436, %v428
        %v581 = vunpack.c.l.b16 %v285
        %v582 = vunpack.c.l.b16 %v286
        %v583 = vunpack.c.l.b16 %v287
        %v584 = vunpack.c.l.b16 %v288
        %v585 = vunpack.c.l.b16 %v289
        %v586 = vunpack.c.l.b16 %v290
        %v587 = vunpack.c.l.b16 %v291
        %v588 = vunpack.c.l.b16 %v292
        %v589 = vunpack.c.l.b16 %v293
        %v590 = vunpack.c.l.b16 %v294
        %v591 = vunpack.c.l.b16 %v295
        %v592 = vunpack.c.l.b16 %v296
        %v593 = vunpack.c.l.b16 %v297
        %v594 = vunpack.c.l.b16 %v298
        %v595 = vunpack.c.l.b16 %v299
        %v596 = vunpack.c.l.b16 %v300
        %v597 = vunpack.c.l.b16 %v301
        %v598 = vunpack.c.l.b16 %v302
        %v599 = vunpack.c.l.b16 %v303
        %v600 = vunpack.c.l.b16 %v304
        %v601 = vunpack.c.l.b16 %v305
        %v602 = vunpack.c.l.b16 %v306
        %v603 = vunpack.c.l.b16 %v307
        %v604 = vunpack.c.l.b16 %v308
        %v605 = vunpack.c.l.b16 %v309
        %v606 = vunpack.c.l.b16 %v310
        %v607 = vunpack.c.l.b16 %v311
        %v608 = vunpack.c.l.b16 %v312
        %v609 = vunpack.c.l.b16 %v313
        %v610 = vunpack.c.l.b16 %v314
        %v611 = vunpack.c.l.b16 %v315
        %v612 = vunpack.c.l.b16 %v316
        %v613 = vunpack.c.l.b16 %v317
        %v614 = vunpack.c.l.b16 %v318
        %v615 = vunpack.c.l.b16 %v319
        %v616 = vunpack.c.l.b16 %v320
        %v617 = vunpack.c.l.b16 %v321
        %v618 = vunpack.c.l.b16 %v322
        %v619 = vunpack.c.l.b16 %v323
        %v620 = vunpack.c.l.b16 %v324
        %v621 = vunpack.c.l.b16 %v325
        %v622 = vunpack.c.l.b16 %v326
        %v623 = vunpack.c.l.b16 %v327
        %v624 = vunpack.c.l.b16 %v328
        %v625 = vunpack.c.l.b16 %v329
        %v626 = vunpack.c.l.b16 %v330
        %v627 = vunpack.c.l.b16 %v331
        %v628 = vunpack.c.l.b16 %v332
        %v629 = vunpack.c.l.b16 %v333
        %v630 = vunpack.c.l.b16 %v334
        %v631 = vunpack.c.l.b16 %v335
        %v632 = vunpack.c.l.b16 %v336
        %v633 = vunpack.c.l.b16 %v337
        %v634 = vunpack.c.l.b16 %v338
        %v635 = vunpack.c.l.b16 %v339
        %v636 = vunpack.c.l.b16 %v340
        %v637 = vunpack.c.l.b16 %v341
        %v638 = vunpack.c.l.b16 %v342
        %v639 = vunpack.c.l.b16 %v343
        %v640 = vunpack.c.l.b16 %v344
        %v641 = vunpack.c.l.b16 %v345
        %v642 = vunpack.c.l.b16 %v346
        %v643 = vunpack.c.l.b16 %v347
        %v644 = vunpack.c.l.b16 %v348
        %v645 = vunpack.c.l.b16 %v349
        %v646 = vunpack.c.l.b16 %v350
        %v647 = vunpack.c.l.b16 %v351
        %v648 = vunpack.c.l.b16 %v352
        %v649 = vunpack.c.l.b16 %v353
        %v650 = vunpack.c.l.b16 %v354
        %v651 = vunpack.c.l.b16 %v355
        %v652 = vunpack.c.l.b16 %v356
        %v653 = vunpack.c.l.b16 %v357
        %v654 = vunpack.c.l.b16 %v358
        %v655 = vunpack.c.l.b16 %v359
        %v656 = vunpack.c.l.b16 %v360
        %v657 = vunpack.c.l.b16 %v361
        %v658 = vunpack.c.l.b16 %v362
        %v659 = vunpack.c.l.b16 %v363
        %v660 = vunpack.c.l.b16 %v364
        %v661 = vunpack.c.l.b16 %v365
        %v662 = vunpack.c.l.b16 %v366
        %v663 = vunpack.c.l.b16 %v367
        %v664 = vunpack.c.l.b16 %v368
        %v665 = vunpack.c.l.b16 %v369
        %v666 = vunpack.c.l.b16 %v370
        %v667 = vunpack.c.l.b16 %v371
        %v668 = vunpack.c.l.b16 %v372
        %v669 = vunpack.c.l.b16 %v373
        %v670 = vunpack.c.l.b16 %v374
        %v671 = vunpack.c.l.b16 %v375
        %v672 = vunpack.c.l.b16 %v376
        %v673 = vunpack.c.l.b16 %v377
        %v674 = vunpack.c.l.b16 %v378
        %v675 = vunpack.c.l.b16 %v379
        %v676 = vunpack.c.l.b16 %v380
        %v677 = vunpack.c.l.b16 %v381
        %v678 = vunpack.c.l.b16 %v382
        %v679 = vunpack.c.l.b16 %v383
        %v680 = vunpack.c.l.b16 %v384
        %v681 = vunpack.c.l.b16 %v385
        %v682 = vunpack.c.l.b16 %v386
        %v683 = vunpack.c.l.b16 %v387
        %v684 = vunpack.c.l.b16 %v388
        %v685 = vunpack.c.l.b16 %v389
        %v686 = vunpack.c.l.b16 %v390
        %v687 = vunpack.c.l.b16 %v391
        %v688 = vunpack.c.l.b16 %v392
        %v689 = vunpack.c.l.b16 %v393
        %v690 = vunpack.c.l.b16 %v394
        %v691 = vunpack.c.l.b16 %v395
        %v692 = vunpack.c.l.b16 %v396
        %v693 = vunpack.c.l.b16 %v397
        %v694 = vunpack.c.l.b16 %v398
        %v695 = vunpack.c.l.b16 %v399
        %v696 = vunpack.c.l.b16 %v400
        %v697 = vunpack.c.l.b16 %v401
        %v698 = vunpack.c.l.b16 %v402
        %v699 = vunpack.c.l.b16 %v403
        %v700 = vunpack.c.l.b16 %v404
        %v701 = vunpack.c.l.b16 %v405
        %v702 = vunpack.c.l.b16 %v406
        %v703 = vunpack.c.l.b16 %v407
        %v704 = vunpack.c.l.b16 %v408
        %v705 = vunpack.c.l.b16 %v409
        %v706 = vunpack.c.l.b16 %v410
        %v707 = vunpack.c.l.b16 %v411
        %v708 = vunpack.c.l.b16 %v412
        %v709 = vpack.c.b16 %v582, %v581
        %v710 = vpack.c.b16 %v584, %v583
        %v711 = vpack.c.b16 %v586, %v585
        %v712 = vpack.c.b16 %v588, %v587
        %v713 = vpack.c.b16 %v590, %v589
        %v714 = vpack.c.b16 %v592, %v591
        %v715 = vpack.c.b16 %v594, %v593
        %v716 = vpack.c.b16 %v596, %v595
        %v717 = vpack.c.b16 %v598, %v597
        %v718 = vpack.c.b16 %v600, %v599
        %v719 = vpack.c.b16 %v602, %v601
        %v720 = vpack.c.b16 %v604, %v603
        %v721 = vpack.c.b16 %v606, %v605
        %v722 = vpack.c.b16 %v608, %v607
        %v723 = vpack.c.b16 %v610, %v609
        %v724 = vpack.c.b16 %v612, %v611
        %v725 = vpack.c.b16 %v614, %v613
        %v726 = vpack.c.b16 %v616, %v615
        %v727 = vpack.c.b16 %v618, %v617
        %v728 = vpack.c.b16 %v620, %v619
        %v729 = vpack.c.b16 %v622, %v621
        %v730 = vpack.c.b16 %v624, %v623
        %v731 = vpack.c.b16 %v626, %v625
        %v732 = vpack.c.b16 %v628, %v627
        %v733 = vpack.c.b16 %v630, %v629
        %v734 = vpack.c.b16 %v632, %v631
        %v735 = vpack.c.b16 %v634, %v633
        %v736 = vpack.c.b16 %v636, %v635
        %v737 = vpack.c.b16 %v638, %v637
        %v738 = vpack.c.b16 %v640, %v639
        %v739 = vpack.c.b16 %v642, %v641
        %v740 = vpack.c.b16 %v644, %v643
        %v741 = vpack.c.b16 %v646, %v645
        %v742 = vpack.c.b16 %v648, %v647
        %v743 = vpack.c.b16 %v650, %v649
        %v744 = vpack.c.b16 %v652, %v651
        %v745 = vpack.c.b16 %v654, %v653
        %v746 = vpack.c.b16 %v656, %v655
        %v747 = vpack.c.b16 %v658, %v657
        %v748 = vpack.c.b16 %v660, %v659
        %v749 = vpack.c.b16 %v662, %v661
        %v750 = vpack.c.b16 %v664, %v663
        %v751 = vpack.c.b16 %v666, %v665
        %v752 = vpack.c.b16 %v668, %v667
        %v753 = vpack.c.b16 %v670, %v669
        %v754 = vpack.c.b16 %v672, %v671
        %v755 = vpack.c.b16 %v674, %v673
        %v756 = vpack.c.b16 %v676, %v675
        %v757 = vpack.c.b16 %v678, %v677
        %v758 = vpack.c.b16 %v680, %v679
        %v759 = vpack.c.b16 %v682, %v681
        %v760 = vpack.c.b16 %v684, %v683
        %v761 = vpack.c.b16 %v686, %v685
        %v762 = vpack.c.b16 %v688, %v687
        %v763 = vpack.c.b16 %v690, %v689
        %v764 = vpack.c.b16 %v692, %v691
        %v765 = vpack.c.b16 %v694, %v693
        %v766 = vpack.c.b16 %v696, %v695
        %v767 = vpack.c.b16 %v698, %v697
        %v768 = vpack.c.b16 %v700, %v699
        %v769 = vpack.c.b16 %v702, %v701
        %v770 = vpack.c.b16 %v704, %v703
        %v771 = vpack.c.b16 %v706, %v705
        %v772 = vpack.c.b16 %v708, %v707
        %837 = vmatpush.bf16.msra.mxu0 %v716
        %838 = vmatpush.bf16.msra.mxu0 %v715
        %839 = vmatpush.bf16.msra.mxu0 %v714
        %840 = vmatpush.bf16.msra.mxu0 %v713
        %841 = vmatpush.bf16.msra.mxu0 %v712
        %842 = vmatpush.bf16.msra.mxu0 %v711
        %843 = vmatpush.bf16.msra.mxu0 %v710
        %844 = vmatpush.bf16.msra.mxu0 %v709
        %845 = vmatmul.bf16.gmra.mxu0 %v437
        %v846 = vpop.f32.mrf.mxu0
        %v847 = vadd.f32 0.0, %v846
        %v848 = vpop.f32.mrf.mxu0
        %v849 = vadd.f32 0.0, %v848
        %850 = vdwg.mxu0
        %851 = vmatpush.bf16.msra.mxu0 %v724
        %852 = vmatpush.bf16.msra.mxu0 %v723
        %853 = vmatpush.bf16.msra.mxu0 %v722
        %854 = vmatpush.bf16.msra.mxu0 %v721
        %855 = vmatpush.bf16.msra.mxu0 %v720
        %856 = vmatpush.bf16.msra.mxu0 %v719
        %857 = vmatpush.bf16.msra.mxu0 %v718
        %858 = vmatpush.bf16.msra.mxu0 %v717
        %859 = vmatmul.bf16.gmra.mxu0 %v438
        %v860 = vpop.f32.mrf.mxu0
        %v861 = vadd.f32 %v847, %v860
        %v862 = vpop.f32.mrf.mxu0
        %v863 = vadd.f32 %v849, %v862
        %864 = vdwg.mxu0
        %865 = vmatpush.bf16.msra.mxu0 %v732
        %866 = vmatpush.bf16.msra.mxu0 %v731
        %867 = vmatpush.bf16.msra.mxu0 %v730
        %868 = vmatpush.bf16.msra.mxu0 %v729
        %869 = vmatpush.bf16.msra.mxu0 %v728
        %870 = vmatpush.bf16.msra.mxu0 %v727
        %871 = vmatpush.bf16.msra.mxu0 %v726
        %872 = vmatpush.bf16.msra.mxu0 %v725
        %873 = vmatmul.bf16.gmra.mxu0 %v439
        %v874 = vpop.f32.mrf.mxu0
        %v875 = vadd.f32 %v861, %v874
        %v876 = vpop.f32.mrf.mxu0
        %v877 = vadd.f32 %v863, %v876
        %878 = vdwg.mxu0
        %879 = vmatpush.bf16.msra.mxu0 %v740
        %880 = vmatpush.bf16.msra.mxu0 %v739
        %881 = vmatpush.bf16.msra.mxu0 %v738
        %882 = vmatpush.bf16.msra.mxu0 %v737
        %883 = vmatpush.bf16.msra.mxu0 %v736
        %884 = vmatpush.bf16.msra.mxu0 %v735
        %885 = vmatpush.bf16.msra.mxu0 %v734
        %886 = vmatpush.bf16.msra.mxu0 %v733
        %887 = vmatmul.bf16.gmra.mxu0 %v440
        %v888 = vpop.f32.mrf.mxu0
        %v889 = vadd.f32 %v875, %v888
        %v890 = vpop.f32.mrf.mxu0
        %v891 = vadd.f32 %v877, %v890
        %892 = vdwg.mxu0
        %893 = vmatpush.bf16.msra.mxu0 %v748
        %894 = vmatpush.bf16.msra.mxu0 %v747
        %895 = vmatpush.bf16.msra.mxu0 %v746
        %896 = vmatpush.bf16.msra.mxu0 %v745
        %897 = vmatpush.bf16.msra.mxu0 %v744
        %898 = vmatpush.bf16.msra.mxu0 %v743
        %899 = vmatpush.bf16.msra.mxu0 %v742
        %900 = vmatpush.bf16.msra.mxu0 %v741
        %901 = vmatmul.bf16.gmra.mxu0 %v441
        %v902 = vpop.f32.mrf.mxu0
        %v903 = vadd.f32 %v889, %v902
        %v904 = vpop.f32.mrf.mxu0
        %v905 = vadd.f32 %v891, %v904
        %906 = vdwg.mxu0
        %907 = vmatpush.bf16.msra.mxu0 %v756
        %908 = vmatpush.bf16.msra.mxu0 %v755
        %909 = vmatpush.bf16.msra.mxu0 %v754
        %910 = vmatpush.bf16.msra.mxu0 %v753
        %911 = vmatpush.bf16.msra.mxu0 %v752
        %912 = vmatpush.bf16.msra.mxu0 %v751
        %913 = vmatpush.bf16.msra.mxu0 %v750
        %914 = vmatpush.bf16.msra.mxu0 %v749
        %915 = vmatmul.bf16.gmra.mxu0 %v442
        %v916 = vpop.f32.mrf.mxu0
        %v917 = vadd.f32 %v903, %v916
        %v918 = vpop.f32.mrf.mxu0
        %v919 = vadd.f32 %v905, %v918
        %920 = vdwg.mxu0
        %921 = vmatpush.bf16.msra.mxu0 %v764
        %922 = vmatpush.bf16.msra.mxu0 %v763
        %923 = vmatpush.bf16.msra.mxu0 %v762
        %924 = vmatpush.bf16.msra.mxu0 %v761
        %925 = vmatpush.bf16.msra.mxu0 %v760
        %926 = vmatpush.bf16.msra.mxu0 %v759
        %927 = vmatpush.bf16.msra.mxu0 %v758
        %928 = vmatpush.bf16.msra.mxu0 %v757
        %929 = vmatmul.bf16.gmra.mxu0 %v443
        %v930 = vpop.f32.mrf.mxu0
        %v931 = vadd.f32 %v917, %v930
        %v932 = vpop.f32.mrf.mxu0
        %v933 = vadd.f32 %v919, %v932
        %934 = vdwg.mxu0
        %935 = vmatpush.bf16.msra.mxu0 %v772
        %936 = vmatpush.bf16.msra.mxu0 %v771
        %937 = vmatpush.bf16.msra.mxu0 %v770
        %938 = vmatpush.bf16.msra.mxu0 %v769
        %939 = vmatpush.bf16.msra.mxu0 %v768
        %940 = vmatpush.bf16.msra.mxu0 %v767
        %941 = vmatpush.bf16.msra.mxu0 %v766
        %942 = vmatpush.bf16.msra.mxu0 %v765
        %943 = vmatmul.bf16.gmra.mxu0 %v444
        %v944 = vpop.f32.mrf.mxu0
        %v945 = vadd.f32 %v931, %v944
        %v946 = vpop.f32.mrf.mxu0
        %v947 = vadd.f32 %v933, %v946
        %948 = vdwg.mxu0
        %v949 = vadd.f32 %v275, %v945
        %v950 = vadd.f32 %v276, %v947
        %951 = vst [vmem:[%s251] sm:$0xff] %v949
        %952 = vst [vmem:[%s251 + $0x8] sm:$0xff] %v950
        // Predicated region
        $region41: #{_dense_forward.1} parent=31 // pred_check
          %p953 = pneg %p269
        $region42: #{_dense_forward.1} parent=31 // pred_check_branch
          %955 = sbr.rel (%p953) target = $region44
        $region43: #{_dense_forward.1} parent=31 // pred_region
          %v956 = vld [vmem:[%s251] sm:$0xff]
          %v957 = vld [vmem:[%s251 + $0x8] sm:$0xff]
          %v958 = vld [vmem:[%s267] sm:$0x1]
          %v960 = vperm.slane %v958, 0
          %v962 = vadd.f32 %v956, %v960
          %v963 = vadd.f32 %v957, %v960
          %vm964 = vcmp.ge.f32.partialorder %v962, 0.0
          %vm965 = vcmp.ge.f32.partialorder %v963, 0.0
          %v966 = vmul.f32 %v962, 0.2
          %v967 = vmul.f32 %v963, 0.2
          %v968 = vsel %vm964, %v962, %v966
          %v969 = vsel %vm965, %v963, %v967
          %v970 = vmul.f32 %v968, 1.4142135
          %v971 = vmul.f32 %v969, 1.4142135
          %972 = vst [vmem:[%s251] sm:$0xff] %v970
          %973 = vst [vmem:[%s251 + $0x8] sm:$0xff] %v971
        $region44: #{_dense_forward.1} parent=31 // pred_fallthru
          _
        %s974 = sand.u32 %s128, 1
        %s975 = sand.u32 %s128, 1
        %s976 = smul.addr %s975, 16
        %s977 = scalar_lea.vmem [#allocation4], %s976
        // Predicated region
        $region45: #{_dense_forward.1} parent=31 // pred_check
          %p978 = pneg %p138
        $region46: #{_dense_forward.1} parent=31 // pred_check_branch
          %980 = sbr.rel (%p978) target = $region48
        $region47: #{_dense_forward.1} parent=31 // pred_region
          %s981 = smul.u32 2, %s22
          %s982 = smul.addr %s981, 2
          %s983 = sadd.s32 %s23, %s982
          %s984 = smul.addr %s983, 8
          %s985 = scalar_lea.vmem %s3, %s984
          // Predicated region
          $region49: #{_dense_forward.1} parent=47 // pred_check
            _
          $region50: #{_dense_forward.1} parent=47 // pred_check_branch
            %987 = sbr.rel (0) target = $region52
          $region51: #{_dense_forward.1} parent=47 // pred_region
            // Predicated region
            $region53: #{_dense_forward.1} parent=51 // pred_check
              _
            $region54: #{_dense_forward.1} parent=51 // pred_check_branch
              %989 = sbr.rel (0) target = $region56
            $region55: #{_dense_forward.1} parent=51 // pred_region
              // Predicated region
              $region68: #{_dense_forward.1} parent=55 // pred_check
                _
              $region69: #{_dense_forward.1} parent=55 // pred_check_branch
                %1007 = sbr.rel (0) target = $region71
              $region70: #{_dense_forward.1} parent=55 // pred_region
                loop: start=0, step=1, limit=1
                $region72: #{_dense_forward.1} parent=70 // loop_pre_header
                  _
                $region73: #{_dense_forward.1} parent=70 // loop_header
                  %s1009 = sphi 0, %s1013
                  %p1010 = scmp.ge.s32.totalorder %s1009, 1
                  %s1014 = sphi %s977, %s977
                  %s1015 = sphi %s985, %s985
                $region74: #{_dense_forward.1} parent=70 // loop_header_branch
                  %1012 = sbr.rel (%p1010) target = $region78
                $region75: #{_dense_forward.1} parent=70 // loop_body
                  %v1016 = vld [vmem:[%s1014] sm:$0xff]
                  %1017 = vst [vmem:[%s1015] sm:$0xff] %v1016
                  %v1018 = vld [vmem:[%s1014 + $0x8] sm:$0xff]
                  %1019 = vst [vmem:[%s1015 + $0x10] sm:$0xff] %v1018
                $region76: #{_dense_forward.1} parent=70 // loop_footer
                  %s1013 = sadd.s32 1, %s1009
                $region77: #{_dense_forward.1} parent=70 // loop_footer_branch
                  %1008 = sbr.rel target = $region73
                $region78: #{_dense_forward.1} parent=70 // loop_exit
                  _
              $region71: #{_dense_forward.1} parent=55 // pred_fallthru
                _
              // Predicated region
              $region79: #{_dense_forward.1} parent=55 // pred_check
                _
              $region80: #{_dense_forward.1} parent=55 // pred_check_branch
                %1021 = sbr.rel target = $region82
              $region81: #{_dense_forward.1} parent=55 // pred_region
                _
              $region82: #{_dense_forward.1} parent=55 // pred_fallthru
                _
            $region56: #{_dense_forward.1} parent=51 // pred_fallthru
              _
            // Predicated region
            $region57: #{_dense_forward.1} parent=51 // pred_check
              _
            $region58: #{_dense_forward.1} parent=51 // pred_check_branch
              %991 = sbr.rel target = $region60
            $region59: #{_dense_forward.1} parent=51 // pred_region
              %s993 = ssub.s32 256, 1
              loop: start=0, step=1, limit=1
              $region61: #{_dense_forward.1} parent=59 // loop_pre_header
                _
              $region62: #{_dense_forward.1} parent=59 // loop_header
                %s995 = sphi 0, %s999
                %p996 = scmp.ge.s32.totalorder %s995, 1
                %s1000 = sphi %s977, %s977
                %s1001 = sphi %s985, %s985
              $region63: #{_dense_forward.1} parent=59 // loop_header_branch
                %998 = sbr.rel (%p996) target = $region67
              $region64: #{_dense_forward.1} parent=59 // loop_body
                %v1002 = vld [vmem:[%s1000] sm:%s993]
                %1003 = vst [vmem:[%s1001] sm:%s993] %v1002
                %v1004 = vld [vmem:[%s1000 + $0x8] sm:%s993]
                %1005 = vst [vmem:[%s1001 + $0x10] sm:%s993] %v1004
              $region65: #{_dense_forward.1} parent=59 // loop_footer
                %s999 = sadd.s32 1, %s995
              $region66: #{_dense_forward.1} parent=59 // loop_footer_branch
                %994 = sbr.rel target = $region62
              $region67: #{_dense_forward.1} parent=59 // loop_exit
                _
            $region60: #{_dense_forward.1} parent=51 // pred_fallthru
              _
          $region52: #{_dense_forward.1} parent=47 // pred_fallthru
            _
          %1022 = vnop
        $region48: #{_dense_forward.1} parent=31 // pred_fallthru
          _
      $region32: #{_dense_forward.1} parent=5 // pred_fallthru
        _
      %p1023 = scmp.le.s32.totalorder 2, %s12
      // Predicated region
      $region83: #{_dense_forward.1} parent=5 // pred_check
        %p1024 = pneg %p1023
      $region84: #{_dense_forward.1} parent=5 // pred_check_branch
        %1026 = sbr.rel (%p1024) target = $region86
      $region85: #{_dense_forward.1} parent=5 // pred_region
        %s1027 = ssub.s32 %s12, 2
        // Predicated region
        $region87: #{_dense_forward.1} parent=85 // pred_check
          %p1028 = pneg %p144
        $region88: #{_dense_forward.1} parent=85 // pred_check_branch
          %1030 = sbr.rel (%p1028) target = $region90
        $region89: #{_dense_forward.1} parent=85 // pred_region
          %s1031 = sand.u32 %s129, 1
          %s1032 = sand.u32 %s129, 1
          %s1033 = smul.addr %s1032, 16
          %s1034 = scalar_lea.vmem [#allocation4], %s1033
        $region90: #{_dense_forward.1} parent=85 // pred_fallthru
          _
      $region86: #{_dense_forward.1} parent=5 // pred_fallthru
        _
    $region6: #{_dense_forward.1} parent=1 // loop_footer
      %s16 = sadd.s32 1, %s12
    $region7: #{_dense_forward.1} parent=1 // loop_footer_branch
      %11 = sbr.rel target = $region3
    $region8: #{_dense_forward.1} parent=1 // loop_exit
      _
    %1035 = vsyncpa [#allocation3], 1
    %s1036 = scalar_lea.sflag [#allocation3], 1
    %1037 = vsyncpa %s1036, 1

</llo_original>
